<compile_context>
chip_gen: v5e
topology: v5e:2x2
jax: 0.10.0
libtpu: 0.0.40
codegen_flags: <defaults>
</compile_context>

<pallas_src>
import functools

import jax
import jax.numpy as jnp
from jax.experimental import pallas as pl
from jax.experimental.pallas import tpu as pltpu


def _round_up(x, m):
    return (x + m - 1) // m * m


def _dilated_conv_norm_kernel(x_ref, w_ref, p_ref, o_ref, y_ref, *,
                              kernel_size, dilation, stride, groups,
                              out_channels, l_out, l_out_pad, eps):
    """One grid step = `bt` batch elements, full (C_out, L_out_pad) tile each.

    x_ref: (bt, C_in, L_in_al)       bf16 (compute dtype)
    w_ref: (C_out, K * C_in//groups) bf16, tap-major columns (k*cig + c)
    p_ref: (C_out, 3) f32            columns = [bias, gamma, beta]
    o_ref: (bt, C_out, L_out_pad)
    y_ref: (C_out, L_out_pad) f32 VMEM scratch (used only when groups > 1)
    """
    bt, c_in, _ = x_ref.shape
    cig = c_in // groups
    cog = out_channels // groups

    bias = p_ref[:, 0:1]      # (C_out, 1) f32
    gamma = p_ref[:, 1:2]
    beta = p_ref[:, 2:3]
    w = w_ref[...]            # (C_out, K*cig) bf16

    need_mask = l_out_pad != l_out
    if need_mask:
        col = jax.lax.broadcasted_iota(jnp.int32, (1, l_out_pad), 1)
        mask = (col < l_out).astype(jnp.float32)
    denom = jnp.float32(out_channels * l_out)   # true element count for LN

    for i in range(bt):
        x_b = x_ref[i]        # (C_in, L_in_al) bf16

        def conv_group(g):
            x_g = x_b[g * cig:(g + 1) * cig, :]
            taps = []
            for k in range(kernel_size):
                start = k * dilation
                if stride == 1:
                    taps.append(x_g[:, start:start + l_out_pad])
                else:
                    # TODO(synk): strided lane slice lowers to XLU gathers; a
                    # pre-strided layout / strided DMA would avoid this.
                    stop = start + (l_out_pad - 1) * stride + 1
                    taps.append(x_g[:, start:stop:stride])
            x_unf = taps[0] if kernel_size == 1 else jnp.concatenate(taps, axis=0)
            # Single MXU contraction over K*cig (bf16 in, f32 accumulate).
            return jnp.dot(w[g * cog:(g + 1) * cog, :], x_unf,
                           preferred_element_type=jnp.float32)

        if groups == 1:
            y = conv_group(0)
        else:
            for g in range(groups):
                y_ref[g * cog:(g + 1) * cog, :] = conv_group(g)
            y = y_ref[...]

        y = y + bias                                     # (C_out, L_out_pad) f32

        # GlobLN over (channel, time) of this batch element: one-pass sum /
        # sum-of-squares, padded columns masked out, gamma*rsqrt folded into a
        # single per-channel scale applied with one multiply-add.
        yv = y * mask if need_mask else y
        s1 = jnp.sum(yv)
        s2 = jnp.sum(yv * yv)
        mean = s1 / denom
        var = jnp.maximum(s2 / denom - mean * mean, 0.0)
        scale = gamma * jax.lax.rsqrt(var + eps)         # (C_out, 1)
        shift = beta - mean * scale
        o_ref[i] = (y * scale + shift).astype(o_ref.dtype)


def dilated_conv_norm(x, weight, bias, gamma, beta, *,
                      kernel_size, stride=1, dilation=1, groups=1,
                      eps=1e-8, batch_block=None, compute_dtype=jnp.bfloat16):
    """x: (B, C_in, L). weight: (C_out, C_in//groups, K). Returns (B, C_out, L_out)."""
    B, C_in, L = x.shape
    C_out = weight.shape[0]
    cig = C_in // groups
    K = kernel_size

    pad = (K - 1) // 2 * dilation
    l_conv_in = L + 2 * pad
    l_out = (l_conv_in - dilation * (K - 1) - 1) // stride + 1

    # Lane-dense tiles: round output length (and the input window needed to
    # produce it) up to a multiple of 128 so loads/stores are unmasked.
    l_out_pad = _round_up(l_out, 128)
    need_in = (l_out_pad - 1) * stride + (K - 1) * dilation + 1
    l_in_al = _round_up(max(l_conv_in, need_in), 128)

    # Single combined pad: conv halo (left) + lane alignment (right), then cast
    # once to bf16 for the MXU path (halves x's DMA/VMEM footprint).
    x_pad = jnp.pad(x, ((0, 0), (0, 0), (pad, l_in_al - L - pad)))
    x_pad = x_pad.astype(compute_dtype)

    # Tap-major flattened weights: (C_out, cig, K) -> (C_out, K*cig).  No more
    # per-tap slicing of a tiny lane axis inside the kernel.
    w_flat = jnp.transpose(weight, (0, 2, 1)).reshape(C_out, K * cig)
    w_flat = w_flat.astype(compute_dtype)

    # bias / gamma / beta packed into one (C_out, 3) f32 tile (one DMA).
    params = jnp.stack([bias, gamma, beta], axis=1).astype(jnp.float32)

    if batch_block is None:
        batch_block = 2 if B % 2 == 0 else 1
    assert B % batch_block == 0, (B, batch_block)
    bt = batch_block

    kernel = functools.partial(
        _dilated_conv_norm_kernel,
        kernel_size=K, dilation=dilation, stride=stride, groups=groups,
        out_channels=C_out, l_out=l_out, l_out_pad=l_out_pad, eps=eps)

    out = pl.pallas_call(
        kernel,
        out_shape=jax.ShapeDtypeStruct((B, C_out, l_out_pad), x.dtype),
        grid_spec=pltpu.PrefetchScalarGridSpec(
            num_scalar_prefetch=0,
            grid=(B // bt,),
            in_specs=[
                pl.BlockSpec((bt, C_in, l_in_al), lambda i: (i, 0, 0)),
                pl.BlockSpec((C_out, K * cig), lambda i: (0, 0)),
                pl.BlockSpec((C_out, 3), lambda i: (0, 0)),
            ],
            out_specs=pl.BlockSpec((bt, C_out, l_out_pad), lambda i: (i, 0, 0)),
            scratch_shapes=[pltpu.VMEM((C_out, l_out_pad), jnp.float32)],
        ),
        compiler_params=pltpu.CompilerParams(
            dimension_semantics=("parallel",),
            vmem_limit_bytes=32 * 1024 * 1024),
    )(x_pad, w_flat, params)

    if l_out_pad != l_out:
        out = out[:, :, :l_out]
    return out


def _reference(x, weight, bias, gamma, beta, *, stride, dilation, groups, pad,
               eps=1e-8, compute_dtype=jnp.bfloat16):
    # Reference uses the same bf16-rounded conv inputs (f32 accumulation), so
    # the comparison isolates kernel logic rather than bf16 rounding of inputs.
    y = jax.lax.conv_general_dilated(
        x.astype(compute_dtype), weight.astype(compute_dtype),
        window_strides=(stride,), padding=[(pad, pad)],
        rhs_dilation=(dilation,), dimension_numbers=("NCH", "OIH", "NCH"),
        feature_group_count=groups,
        preferred_element_type=jnp.float32)
    y = y + bias[None, :, None]
    mean = jnp.mean(y, axis=(1, 2), keepdims=True)
    var = jnp.mean((y - mean) ** 2, axis=(1, 2), keepdims=True)
    normed = (y - mean) / jnp.sqrt(var + eps)
    return (gamma[None, :, None] * normed + beta[None, :, None]).astype(x.dtype)


def _run_case(key, B, C_in, C_out, L, K, stride, dilation, groups):
    pad = (K - 1) // 2 * dilation
    kx, kw, kb = jax.random.split(key, 3)
    x = jax.random.normal(kx, (B, C_in, L), dtype=jnp.float32)
    weight = 0.1 * jax.random.normal(kw, (C_out, C_in // groups, K),
                                     dtype=jnp.float32)
    bias = 0.1 * jax.random.normal(kb, (C_out,), dtype=jnp.float32)
    gamma = jnp.ones((C_out,), dtype=jnp.float32)
    beta = jnp.zeros((C_out,), dtype=jnp.float32)

    out = dilated_conv_norm(x, weight, bias, gamma, beta,
                            kernel_size=K, stride=stride,
                            dilation=dilation, groups=groups)
    out = jax.block_until_ready(out)

    ref = _reference(x, weight, bias, gamma, beta,
                     stride=stride, dilation=dilation, groups=groups, pad=pad)
    assert out.shape == ref.shape, (out.shape, ref.shape)
    err = float(jnp.max(jnp.abs(out - ref)))
    assert jnp.allclose(out, ref, atol=2e-3, rtol=2e-3), err


if __name__ == "__main__":
    key = jax.random.PRNGKey(0)
    k1, k2 = jax.random.split(key)

    # Case 1: matches the DilatedConvNorm defaults used in AFRCNN-style models
    # (groups=1, dilation=2), lane-aligned output length.
    _run_case(k1, B=2, C_in=8, C_out=16, L=128, K=5, stride=1, dilation=2, groups=1)

    # Case 2: grouped conv + non-128-multiple length (exercises the masked-LN
    # and per-group-scratch paths).
    _run_case(k2, B=2, C_in=16, C_out=16, L=100, K=3, stride=1, dilation=1, groups=2)

    print("KERNEL_OK")
</pallas_src>

<mosaic_0001>
module attributes {stable_mosaic.version = 11 : i64} {
  func.func @_dilated_conv_norm_kernel(%arg0: i32, %arg1: memref<2x8x256xbf16, #tpu.memory_space<vmem>>, %arg2: memref<16x40xbf16, #tpu.memory_space<vmem>>, %arg3: memref<16x3xf32, #tpu.memory_space<vmem>>, %arg4: memref<2x16x128xf32, #tpu.memory_space<vmem>>, %arg5: memref<16x128xf32, #tpu.memory_space<vmem>>) attributes {dimension_semantics = [#tpu.dimension_semantics<parallel>], iteration_bounds = array<i64: 1>, scalar_prefetch = 0 : i64, scratch_operands = 1 : i64, tpu.core_type = #tpu.core_type<tc>, window_params = [{transform_indices = @transform_0, window_bounds = array<i64: 2, 8, 256>}, {pipeline_mode = #tpu.pipeline_mode<synchronous>, transform_indices = @transform_1, window_bounds = array<i64: 16, 40>}, {pipeline_mode = #tpu.pipeline_mode<synchronous>, transform_indices = @transform_2, window_bounds = array<i64: 16, 3>}, {transform_indices = @transform_3, window_bounds = array<i64: 2, 16, 128>}]} {
    %c0 = arith.constant 0 : index
    %c0_0 = arith.constant 0 : index
    %0 = vector.load %arg3[%c0, %c0_0] : memref<16x3xf32, #tpu.memory_space<vmem>>, vector<16x1xf32>
    %c0_1 = arith.constant 0 : index
    %c1 = arith.constant 1 : index
    %1 = vector.load %arg3[%c0_1, %c1] : memref<16x3xf32, #tpu.memory_space<vmem>>, vector<16x1xf32>
    %c0_2 = arith.constant 0 : index
    %c2 = arith.constant 2 : index
    %2 = vector.load %arg3[%c0_2, %c2] : memref<16x3xf32, #tpu.memory_space<vmem>>, vector<16x1xf32>
    %c0_3 = arith.constant 0 : index
    %c0_4 = arith.constant 0 : index
    %3 = vector.load %arg2[%c0_3, %c0_4] : memref<16x40xbf16, #tpu.memory_space<vmem>>, vector<16x40xbf16>
    %c0_5 = arith.constant 0 : index
    %c0_6 = arith.constant 0 : index
    %c0_7 = arith.constant 0 : index
    %4 = vector.load %arg1[%c0_5, %c0_6, %c0_7] : memref<2x8x256xbf16, #tpu.memory_space<vmem>>, vector<1x8x256xbf16>
    %5 = vector.shape_cast %4 : vector<1x8x256xbf16> to vector<8x256xbf16>
    %6 = vector.extract_strided_slice %5 {offsets = [0, 0], sizes = [8, 128], strides = [1, 1]} : vector<8x256xbf16> to vector<8x128xbf16>
    %7 = vector.extract_strided_slice %5 {offsets = [0, 2], sizes = [8, 128], strides = [1, 1]} : vector<8x256xbf16> to vector<8x128xbf16>
    %8 = vector.extract_strided_slice %5 {offsets = [0, 4], sizes = [8, 128], strides = [1, 1]} : vector<8x256xbf16> to vector<8x128xbf16>
    %9 = vector.extract_strided_slice %5 {offsets = [0, 6], sizes = [8, 128], strides = [1, 1]} : vector<8x256xbf16> to vector<8x128xbf16>
    %10 = vector.extract_strided_slice %5 {offsets = [0, 8], sizes = [8, 128], strides = [1, 1]} : vector<8x256xbf16> to vector<8x128xbf16>
    %11 = tpu.concatenate %6, %7, %8, %9, %10 in 0 : vector<8x128xbf16>, vector<8x128xbf16>, vector<8x128xbf16>, vector<8x128xbf16>, vector<8x128xbf16> -> vector<40x128xbf16>
    %cst = arith.constant dense<0.000000e+00> : vector<16x128xf32>
    %12 = tpu.matmul %3, %11, %cst {dimension_numbers = #tpu.dot_dimension_numbers<[1], [0], [0], [1], [0, 0, 1, 1], [], []>} : vector<16x40xbf16>, vector<40x128xbf16>, vector<16x128xf32> -> vector<16x128xf32>
    %13 = vector.broadcast %0 : vector<16x1xf32> to vector<16x128xf32>
    %14 = arith.addf %12, %13 : vector<16x128xf32>
    %15 = vector.shape_cast %14 : vector<16x128xf32> to vector<1x16x128xf32>
    %cst_8 = arith.constant dense<0.000000e+00> : vector<1xf32>
    %16 = vector.multi_reduction <add>, %15, %cst_8 [1, 2] : vector<1x16x128xf32> to vector<1xf32>
    %17 = vector.shape_cast %16 : vector<1xf32> to vector<1x1x1xf32>
    %18 = vector.extract %17[0, 0, 0] : f32 from vector<1x1x1xf32>
    %19 = arith.mulf %14, %14 : vector<16x128xf32>
    %20 = vector.shape_cast %19 : vector<16x128xf32> to vector<1x16x128xf32>
    %cst_9 = arith.constant dense<0.000000e+00> : vector<1xf32>
    %21 = vector.multi_reduction <add>, %20, %cst_9 [1, 2] : vector<1x16x128xf32> to vector<1xf32>
    %22 = vector.shape_cast %21 : vector<1xf32> to vector<1x1x1xf32>
    %23 = vector.extract %22[0, 0, 0] : f32 from vector<1x1x1xf32>
    %cst_10 = arith.constant 2.048000e+03 : f32
    %24 = arith.divf %18, %cst_10 : f32
    %cst_11 = arith.constant 2.048000e+03 : f32
    %25 = arith.divf %23, %cst_11 : f32
    %26 = arith.mulf %24, %24 : f32
    %27 = arith.subf %25, %26 : f32
    %cst_12 = arith.constant 0.000000e+00 : f32
    %28 = arith.maximumf %27, %cst_12 : f32
    %cst_13 = arith.constant 9.99999993E-9 : f32
    %29 = arith.addf %28, %cst_13 : f32
    %30 = math.rsqrt %29 : f32
    %31 = vector.broadcast %30 : f32 to vector<16x1xf32>
    %32 = arith.mulf %1, %31 : vector<16x1xf32>
    %33 = vector.broadcast %24 : f32 to vector<16x1xf32>
    %34 = arith.mulf %33, %32 : vector<16x1xf32>
    %35 = arith.subf %2, %34 : vector<16x1xf32>
    %36 = vector.broadcast %32 : vector<16x1xf32> to vector<16x128xf32>
    %37 = arith.mulf %14, %36 : vector<16x128xf32>
    %38 = vector.broadcast %35 : vector<16x1xf32> to vector<16x128xf32>
    %39 = arith.addf %37, %38 : vector<16x128xf32>
    %c0_14 = arith.constant 0 : index
    %c0_15 = arith.constant 0 : index
    %c0_16 = arith.constant 0 : index
    %40 = vector.load %arg4[%c0_14, %c0_15, %c0_16] : memref<2x16x128xf32, #tpu.memory_space<vmem>>, vector<1x16x128xf32>
    %41 = vector.shape_cast %40 : vector<1x16x128xf32> to vector<16x128xf32>
    %42 = vector.shape_cast %39 : vector<16x128xf32> to vector<1x16x128xf32>
    tpu.vector_store %arg4[%c0_14, %c0_15, %c0_16], %42 {strides = array<i32>} : memref<2x16x128xf32, #tpu.memory_space<vmem>>, vector<1x16x128xf32>,
    %c1_17 = arith.constant 1 : index
    %c0_18 = arith.constant 0 : index
    %c0_19 = arith.constant 0 : index
    %43 = vector.load %arg1[%c1_17, %c0_18, %c0_19] : memref<2x8x256xbf16, #tpu.memory_space<vmem>>, vector<1x8x256xbf16>
    %44 = vector.shape_cast %43 : vector<1x8x256xbf16> to vector<8x256xbf16>
    %45 = vector.extract_strided_slice %44 {offsets = [0, 0], sizes = [8, 128], strides = [1, 1]} : vector<8x256xbf16> to vector<8x128xbf16>
    %46 = vector.extract_strided_slice %44 {offsets = [0, 2], sizes = [8, 128], strides = [1, 1]} : vector<8x256xbf16> to vector<8x128xbf16>
    %47 = vector.extract_strided_slice %44 {offsets = [0, 4], sizes = [8, 128], strides = [1, 1]} : vector<8x256xbf16> to vector<8x128xbf16>
    %48 = vector.extract_strided_slice %44 {offsets = [0, 6], sizes = [8, 128], strides = [1, 1]} : vector<8x256xbf16> to vector<8x128xbf16>
    %49 = vector.extract_strided_slice %44 {offsets = [0, 8], sizes = [8, 128], strides = [1, 1]} : vector<8x256xbf16> to vector<8x128xbf16>
    %50 = tpu.concatenate %45, %46, %47, %48, %49 in 0 : vector<8x128xbf16>, vector<8x128xbf16>, vector<8x128xbf16>, vector<8x128xbf16>, vector<8x128xbf16> -> vector<40x128xbf16>
    %cst_20 = arith.constant dense<0.000000e+00> : vector<16x128xf32>
    %51 = tpu.matmul %3, %50, %cst_20 {dimension_numbers = #tpu.dot_dimension_numbers<[1], [0], [0], [1], [0, 0, 1, 1], [], []>} : vector<16x40xbf16>, vector<40x128xbf16>, vector<16x128xf32> -> vector<16x128xf32>
    %52 = vector.broadcast %0 : vector<16x1xf32> to vector<16x128xf32>
    %53 = arith.addf %51, %52 : vector<16x128xf32>
    %54 = vector.shape_cast %53 : vector<16x128xf32> to vector<1x16x128xf32>
    %cst_21 = arith.constant dense<0.000000e+00> : vector<1xf32>
    %55 = vector.multi_reduction <add>, %54, %cst_21 [1, 2] : vector<1x16x128xf32> to vector<1xf32>
    %56 = vector.shape_cast %55 : vector<1xf32> to vector<1x1x1xf32>
    %57 = vector.extract %56[0, 0, 0] : f32 from vector<1x1x1xf32>
    %58 = arith.mulf %53, %53 : vector<16x128xf32>
    %59 = vector.shape_cast %58 : vector<16x128xf32> to vector<1x16x128xf32>
    %cst_22 = arith.constant dense<0.000000e+00> : vector<1xf32>
    %60 = vector.multi_reduction <add>, %59, %cst_22 [1, 2] : vector<1x16x128xf32> to vector<1xf32>
    %61 = vector.shape_cast %60 : vector<1xf32> to vector<1x1x1xf32>
    %62 = vector.extract %61[0, 0, 0] : f32 from vector<1x1x1xf32>
    %cst_23 = arith.constant 2.048000e+03 : f32
    %63 = arith.divf %57, %cst_23 : f32
    %cst_24 = arith.constant 2.048000e+03 : f32
    %64 = arith.divf %62, %cst_24 : f32
    %65 = arith.mulf %63, %63 : f32
    %66 = arith.subf %64, %65 : f32
    %cst_25 = arith.constant 0.000000e+00 : f32
    %67 = arith.maximumf %66, %cst_25 : f32
    %cst_26 = arith.constant 9.99999993E-9 : f32
    %68 = arith.addf %67, %cst_26 : f32
    %69 = math.rsqrt %68 : f32
    %70 = vector.broadcast %69 : f32 to vector<16x1xf32>
    %71 = arith.mulf %1, %70 : vector<16x1xf32>
    %72 = vector.broadcast %63 : f32 to vector<16x1xf32>
    %73 = arith.mulf %72, %71 : vector<16x1xf32>
    %74 = arith.subf %2, %73 : vector<16x1xf32>
    %75 = vector.broadcast %71 : vector<16x1xf32> to vector<16x128xf32>
    %76 = arith.mulf %53, %75 : vector<16x128xf32>
    %77 = vector.broadcast %74 : vector<16x1xf32> to vector<16x128xf32>
    %78 = arith.addf %76, %77 : vector<16x128xf32>
    %c1_27 = arith.constant 1 : index
    %c0_28 = arith.constant 0 : index
    %c0_29 = arith.constant 0 : index
    %79 = vector.load %arg4[%c1_27, %c0_28, %c0_29] : memref<2x16x128xf32, #tpu.memory_space<vmem>>, vector<1x16x128xf32>
    %80 = vector.shape_cast %79 : vector<1x16x128xf32> to vector<16x128xf32>
    %81 = vector.shape_cast %78 : vector<16x128xf32> to vector<1x16x128xf32>
    tpu.vector_store %arg4[%c1_27, %c0_28, %c0_29], %81 {strides = array<i32>} : memref<2x16x128xf32, #tpu.memory_space<vmem>>, vector<1x16x128xf32>,
    return
  }
  func.func @transform_0(%arg0: i32) -> (i32, i32, i32) {
    %c0_i32 = arith.constant 0 : i32
    %c0_i32_0 = arith.constant 0 : i32
    %c0_i32_1 = arith.constant 0 : i32
    return %arg0, %c0_i32, %c0_i32_0 : i32, i32, i32
  }
  func.func @transform_1(%arg0: i32) -> (i32, i32) {
    %c0_i32 = arith.constant 0 : i32
    %c0_i32_0 = arith.constant 0 : i32
    %c0_i32_1 = arith.constant 0 : i32
    return %c0_i32, %c0_i32_0 : i32, i32
  }
  func.func @transform_2(%arg0: i32) -> (i32, i32) {
    %c0_i32 = arith.constant 0 : i32
    %c0_i32_0 = arith.constant 0 : i32
    %c0_i32_1 = arith.constant 0 : i32
    return %c0_i32, %c0_i32_0 : i32, i32
  }
  func.func @transform_3(%arg0: i32) -> (i32, i32, i32) {
    %c0_i32 = arith.constant 0 : i32
    %c0_i32_0 = arith.constant 0 : i32
    %c0_i32_1 = arith.constant 0 : i32
    return %arg0, %c0_i32, %c0_i32_0 : i32, i32, i32
  }
}

</mosaic_0001>

<llo_original>
// kernel: tpu_custom_call.1
$region0: #{tpu_custom_call.1}
  #allocation0 [shape = 'u32[]', space=smem, size = 0x4, offset = 0x4, fixed_abs, tag = 'smem constant byte address 0x4 - core index']
  #allocation1 [shape = 'u32[72,128]{1,0:T(1,128)}', space=vmem, size = 0x9000, scoped, tag = 'internal scratch']
  #allocation2 [shape = 'f32[16,128]{1,0:T(8,128)}', space=vmem, size = 0x2000, scoped, tag = 'scratch operand']
  %s0 = inlined_call_operand.vmem [shape: bf16[2,8,256], index: 0, kind: input, shape index: {}]
  %s1 = inlined_call_operand.hbm [shape: bf16[16,40], index: 1, kind: input, shape index: {}]
  %s2 = inlined_call_operand.vmem [shape: f32[16,3], index: 2, kind: input, shape index: {}]
  %s3 = inlined_call_operand.hbm [shape: f32[2,16,128], index: 3, kind: output, shape index: {}]
  %s4 = sld [smem:[#allocation0]]
  $region26: #{tpu_custom_call.1} parent=0
    _
  %s6 = ssub.s32 1, %s4
  %s7 = scalar_select 0, %s6, %s4
  $region1: #{tpu_custom_call.1} parent=0
    #allocation3 [shape = 'u8[4096]{0}', space=vmem, size = 0x1000, scoped, tag = 'input window, operand 1, single buffered']
    #allocation4 [shape = 's32[1]{0}', space=sflag, size = 0x4, scoped, tag = 'scoped memory for tpu_custom_call.1']
    #allocation5 [shape = 's32[1]{0}', space=sflag, size = 0x4, scoped, tag = 'scoped memory for tpu_custom_call.1']
    #allocation6 [shape = 'u8[16384]{0}', space=vmem, size = 0x4000, scoped, tag = 'output window, operand 0, single buffered']
    %8 = vsyncpa [#allocation4], 0
    %9 = vsyncpa [#allocation5], 0
    // Predicated region
    $region2: #{tpu_custom_call.1} parent=1 // pred_check
      _
    $region3: #{tpu_custom_call.1} parent=1 // pred_check_branch
      %11 = sbr.rel (0) target = $region5
    $region4: #{tpu_custom_call.1} parent=1 // pred_region
      _
    $region5: #{tpu_custom_call.1} parent=1 // pred_fallthru
      _
    // Predicated region
    $region6: #{tpu_custom_call.1} parent=1 // pred_check
      _
    $region7: #{tpu_custom_call.1} parent=1 // pred_check_branch
      %13 = sbr.rel (0) target = $region9
    $region8: #{tpu_custom_call.1} parent=1 // pred_region
      %15 = vsyncadd [#allocation4], 0
      %s16 = sshll.u32 %s1, 4
      %s17 = int_to_ptr.hbm [resolvable:$true] %s16
      %s18 = sshll.u32 [#allocation3], 4
      %s19 = int_to_ptr.vmem [resolvable:$true] %s18
      %24 = dma.hbm_to_vmem [thread:$0]  %s17, 128, %s19, [#allocation4], 64, 64, 4
    $region9: #{tpu_custom_call.1} parent=1 // pred_fallthru
      _
    // Predicated region
    $region10: #{tpu_custom_call.1} parent=1 // pred_check
      _
    $region11: #{tpu_custom_call.1} parent=1 // pred_check_branch
      %26 = sbr.rel (0) target = $region13
    $region12: #{tpu_custom_call.1} parent=1 // pred_region
      _
    $region13: #{tpu_custom_call.1} parent=1 // pred_fallthru
      _
    // Predicated region
    $region14: #{tpu_custom_call.1} parent=1 // pred_check
      _
    $region15: #{tpu_custom_call.1} parent=1 // pred_check_branch
      %28 = sbr.rel (0) target = $region17
    $region16: #{tpu_custom_call.1} parent=1 // pred_region
      %30 = dma.done [#allocation4], 128
    $region17: #{tpu_custom_call.1} parent=1 // pred_fallthru
      _
    %v32 = vld [vmem:[%s2] sm:$0xff]
    %v33 = vld [vmem:[%s2 + $0x8] sm:$0xff]
    %v34 = vld [vmem:[#allocation3] sm:$0xf]
    %v35 = vld [vmem:[#allocation3 + $0x4] sm:$0xf]
    %v36 = vld [vmem:[%s0] sm:$0xff]
    %v38 = vunpack.c.l.b16 %v36
    %v39 = vunpack.c.h.b16 %v36
    %v40 = vpack.c.b16 %v38, %v38
    %v41 = vpack.c.b16 %v39, %v39
    %42 = vrot.lane.b32.xlu0 %v40, 126
    %v43 = vpop.permute.xlu0 %42
    %44 = vrot.lane.b32.xlu0 %v41, 126
    %v45 = vpop.permute.xlu0 %44
    %vm46 = vcmask 1031168
    %v47 = vsel %vm46, %v43, %v45
    %48 = vrot.lane.b32.xlu0 %v40, 124
    %v49 = vpop.permute.xlu0 %48
    %50 = vrot.lane.b32.xlu0 %v41, 124
    %v51 = vpop.permute.xlu0 %50
    %vm52 = vcmask 1014784
    %v53 = vsel %vm52, %v49, %v51
    %54 = vrot.lane.b32.xlu0 %v40, 122
    %v55 = vpop.permute.xlu0 %54
    %56 = vrot.lane.b32.xlu0 %v41, 122
    %v57 = vpop.permute.xlu0 %56
    %vm58 = vcmask 998400
    %v59 = vsel %vm58, %v55, %v57
    %60 = vrot.lane.b32.xlu0 %v40, 120
    %v61 = vpop.permute.xlu0 %60
    %62 = vrot.lane.b32.xlu0 %v41, 120
    %v63 = vpop.permute.xlu0 %62
    %vm64 = vcmask 982016
    %v65 = vsel %vm64, %v61, %v63
    %vm66 = vcmask 1043456
    %v69 = vsel %vm66, %v36, %v47
    %v73 = vsel %vm66, %v53, %v59
    %76 = vset.pattern.permute.xlu0 0
    %77 = vperm.xlu0 %76, %v32
    %v78 = vpop.permute.xlu0 %77
    %81 = vset.pattern.permute.xlu0 0
    %82 = vperm.xlu0 %81, %v33
    %v83 = vpop.permute.xlu0 %82
    %v87 = vunpack.c.l.b16 %v34
    %v88 = vunpack.c.l.b16 %v35
    %v89 = vpack.c.b16 %v88, %v87
    %vm90 = vcmask 326656
    %v92 = vsel %vm90, %v89, 0
    %v95 = vsel %vm66, %v65, 0
    %97 = vmatpush.bf16.msra.mxu0 0
    %98 = vmatpush.bf16.msra.mxu0 0
    %99 = vmatpush.bf16.msra.mxu0 0
    %100 = vmatpush.bf16.msra.mxu0 0
    %101 = vmatpush.bf16.msra.mxu0 0
    %102 = vmatpush.bf16.msra.mxu0 %v95
    %103 = vmatpush.bf16.msra.mxu0 %v73
    %104 = vmatpush.bf16.msra.mxu0 %v69
    %105 = vmatmul.bf16.gmra.mxu0 %v92
    %v106 = vpop.f32.mrf.mxu0
    %v107 = vadd.f32 %v78, %v106
    %v108 = vpop.f32.mrf.mxu0
    %v109 = vadd.f32 %v83, %v108
    %110 = vdwg.mxu0
    %v111 = vadd.f32 %v107, %v109
    %112 = vadd.xlane.f32.xlu0 %v111
    %v113 = vpop.xlane.xlu0 %112
    %v114 = vrot.slane %v113, 4
    %v115 = vadd.f32 %v113, %v114
    %v116 = vrot.slane %v115, 2
    %v117 = vadd.f32 %v115, %v116
    %v118 = vrot.slane %v117, 1
    %v119 = vadd.f32 %v117, %v118
    %s120 = vtos %v119
    %v121 = vmul.f32 %v107, %v107
    %v122 = vmul.f32 %v109, %v109
    %v123 = vadd.f32 %v121, %v122
    %124 = vadd.xlane.f32.xlu0 %v123
    %v125 = vpop.xlane.xlu0 %124
    %v126 = vrot.slane %v125, 4
    %v127 = vadd.f32 %v125, %v126
    %v128 = vrot.slane %v127, 2
    %v129 = vadd.f32 %v127, %v128
    %v130 = vrot.slane %v129, 1
    %v131 = vadd.f32 %v129, %v130
    %s132 = vtos %v131
    %v133 = vrcp.pop 2048.0
    %v134 = vmul.f32 2048.0, %v133
    %v135 = vsub.f32 1.0, %v134
    %v136 = vmul.f32 %v133, %v135
    %v137 = vadd.f32 %v133, %v136
    %vm138 = vweird.f32 %v133
    %v139 = vsel %vm138, %v133, %v137
    %s140 = vtos %v139
    %s141 = smul.f32 %s120, %s140
    %v142 = vrcp.pop 2048.0
    %v143 = vmul.f32 2048.0, %v142
    %v144 = vsub.f32 1.0, %v143
    %v145 = vmul.f32 %v142, %v144
    %v146 = vadd.f32 %v142, %v145
    %vm147 = vweird.f32 %v142
    %v148 = vsel %vm147, %v142, %v146
    %s149 = vtos %v148
    %s150 = smul.f32 %s132, %s149
    %s151 = smul.f32 %s141, %s141
    %s152 = ssub.f32 %s150, %s151
    %s153 = smax.f32 %s152, 0.0
    %s154 = sadd.f32 %s153, 1e-08
    %v155 = vstv %s154
    %v156 = vrsqrt.pop %v155
    %v157 = vmul.f32 %v156, %v155
    %v158 = vmul.f32 %v157, %v156
    %v159 = vmul.f32 0.5, %v158
    %v160 = vsub.f32 1.5, %v159
    %v161 = vmul.f32 %v156, %v160
    %vm162 = vweird.f32 %v155
    %vm163 = vweird.f32 %v156
    %vm164 = vmor %vm162, %vm163
    %v165 = vsel %vm164, %v156, %v161
    %s166 = vtos %v165
    %v167 = vstv %s166
    %v168 = vmul.f32 %v32, %v167
    %v169 = vmul.f32 %v33, %v167
    %v170 = vstv %s141
    %v171 = vmul.f32 %v170, %v168
    %v172 = vmul.f32 %v170, %v169
    %175 = vrot.lane.b32.xlu0 %v171, 1
    %v176 = vpop.permute.xlu0 %175
    %177 = vrot.lane.b32.xlu0 %v172, 1
    %v178 = vpop.permute.xlu0 %177
    %v181 = vsub.f32 %v32, %v176
    %v182 = vsub.f32 %v33, %v178
    %184 = vset.pattern.permute.xlu0 1
    %185 = vperm.xlu0 %184, %v168
    %v186 = vpop.permute.xlu0 %185
    %189 = vset.pattern.permute.xlu0 1
    %190 = vperm.xlu0 %189, %v169
    %v191 = vpop.permute.xlu0 %190
    %v193 = vmul.f32 %v107, %v186
    %v194 = vmul.f32 %v109, %v191
    %196 = vset.pattern.permute.xlu0 2
    %197 = vperm.xlu0 %196, %v181
    %v198 = vpop.permute.xlu0 %197
    %201 = vset.pattern.permute.xlu0 2
    %202 = vperm.xlu0 %201, %v182
    %v203 = vpop.permute.xlu0 %202
    %v205 = vadd.f32 %v193, %v198
    %v206 = vadd.f32 %v194, %v203
    %207 = vst [vmem:[#allocation6] sm:$0xff] %v205
    %208 = vst [vmem:[#allocation6 + $0x8] sm:$0xff] %v206
    %s209 = scalar_lea.vmem %s0, 8
    %v210 = vld [vmem:[%s209] sm:$0xff]
    %v212 = vunpack.c.l.b16 %v210
    %v213 = vunpack.c.h.b16 %v210
    %v214 = vpack.c.b16 %v212, %v212
    %v215 = vpack.c.b16 %v213, %v213
    %216 = vrot.lane.b32.xlu0 %v214, 126
    %v217 = vpop.permute.xlu0 %216
    %218 = vrot.lane.b32.xlu0 %v215, 126
    %v219 = vpop.permute.xlu0 %218
    %v220 = vsel %vm46, %v217, %v219
    %221 = vrot.lane.b32.xlu0 %v214, 124
    %v222 = vpop.permute.xlu0 %221
    %223 = vrot.lane.b32.xlu0 %v215, 124
    %v224 = vpop.permute.xlu0 %223
    %v225 = vsel %vm52, %v222, %v224
    %226 = vrot.lane.b32.xlu0 %v214, 122
    %v227 = vpop.permute.xlu0 %226
    %228 = vrot.lane.b32.xlu0 %v215, 122
    %v229 = vpop.permute.xlu0 %228
    %v230 = vsel %vm58, %v227, %v229
    %231 = vrot.lane.b32.xlu0 %v214, 120
    %v232 = vpop.permute.xlu0 %231
    %233 = vrot.lane.b32.xlu0 %v215, 120
    %v234 = vpop.permute.xlu0 %233
    %v235 = vsel %vm64, %v232, %v234
    %v238 = vsel %vm66, %v210, %v220
    %v242 = vsel %vm66, %v225, %v230
    %v245 = vsel %vm66, %v235, 0
    %247 = vmatpush.bf16.msra.mxu0 0
    %248 = vmatpush.bf16.msra.mxu0 0
    %249 = vmatpush.bf16.msra.mxu0 0
    %250 = vmatpush.bf16.msra.mxu0 0
    %251 = vmatpush.bf16.msra.mxu0 0
    %252 = vmatpush.bf16.msra.mxu0 %v245
    %253 = vmatpush.bf16.msra.mxu0 %v242
    %254 = vmatpush.bf16.msra.mxu0 %v238
    %255 = vmatmul.bf16.gmra.mxu0 %v92
    %v256 = vpop.f32.mrf.mxu0
    %v257 = vadd.f32 %v78, %v256
    %v258 = vpop.f32.mrf.mxu0
    %v259 = vadd.f32 %v83, %v258
    %260 = vdwg.mxu0
    %v261 = vadd.f32 %v257, %v259
    %262 = vadd.xlane.f32.xlu0 %v261
    %v263 = vpop.xlane.xlu0 %262
    %v264 = vrot.slane %v263, 4
    %v265 = vadd.f32 %v263, %v264
    %v266 = vrot.slane %v265, 2
    %v267 = vadd.f32 %v265, %v266
    %v268 = vrot.slane %v267, 1
    %v269 = vadd.f32 %v267, %v268
    %s270 = vtos %v269
    %v271 = vmul.f32 %v257, %v257
    %v272 = vmul.f32 %v259, %v259
    %v273 = vadd.f32 %v271, %v272
    %274 = vadd.xlane.f32.xlu0 %v273
    %v275 = vpop.xlane.xlu0 %274
    %v276 = vrot.slane %v275, 4
    %v277 = vadd.f32 %v275, %v276
    %v278 = vrot.slane %v277, 2
    %v279 = vadd.f32 %v277, %v278
    %v280 = vrot.slane %v279, 1
    %v281 = vadd.f32 %v279, %v280
    %s282 = vtos %v281
    %v283 = vrcp.pop 2048.0
    %v284 = vmul.f32 2048.0, %v283
    %v285 = vsub.f32 1.0, %v284
    %v286 = vmul.f32 %v283, %v285
    %v287 = vadd.f32 %v283, %v286
    %vm288 = vweird.f32 %v283
    %v289 = vsel %vm288, %v283, %v287
    %s290 = vtos %v289
    %s291 = smul.f32 %s270, %s290
    %v292 = vrcp.pop 2048.0
    %v293 = vmul.f32 2048.0, %v292
    %v294 = vsub.f32 1.0, %v293
    %v295 = vmul.f32 %v292, %v294
    %v296 = vadd.f32 %v292, %v295
    %vm297 = vweird.f32 %v292
    %v298 = vsel %vm297, %v292, %v296
    %s299 = vtos %v298
    %s300 = smul.f32 %s282, %s299
    %s301 = smul.f32 %s291, %s291
    %s302 = ssub.f32 %s300, %s301
    %s303 = smax.f32 %s302, 0.0
    %s304 = sadd.f32 %s303, 1e-08
    %v305 = vstv %s304
    %v306 = vrsqrt.pop %v305
    %v307 = vmul.f32 %v306, %v305
    %v308 = vmul.f32 %v307, %v306
    %v309 = vmul.f32 0.5, %v308
    %v310 = vsub.f32 1.5, %v309
    %v311 = vmul.f32 %v306, %v310
    %vm312 = vweird.f32 %v305
    %vm313 = vweird.f32 %v306
    %vm314 = vmor %vm312, %vm313
    %v315 = vsel %vm314, %v306, %v311
    %s316 = vtos %v315
    %v317 = vstv %s316
    %v318 = vmul.f32 %v32, %v317
    %v319 = vmul.f32 %v33, %v317
    %v320 = vstv %s291
    %v321 = vmul.f32 %v320, %v318
    %v322 = vmul.f32 %v320, %v319
    %325 = vrot.lane.b32.xlu0 %v321, 1
    %v326 = vpop.permute.xlu0 %325
    %327 = vrot.lane.b32.xlu0 %v322, 1
    %v328 = vpop.permute.xlu0 %327
    %v331 = vsub.f32 %v32, %v326
    %v332 = vsub.f32 %v33, %v328
    %334 = vset.pattern.permute.xlu0 1
    %335 = vperm.xlu0 %334, %v318
    %v336 = vpop.permute.xlu0 %335
    %339 = vset.pattern.permute.xlu0 1
    %340 = vperm.xlu0 %339, %v319
    %v341 = vpop.permute.xlu0 %340
    %v343 = vmul.f32 %v257, %v336
    %v344 = vmul.f32 %v259, %v341
    %346 = vset.pattern.permute.xlu0 2
    %347 = vperm.xlu0 %346, %v331
    %v348 = vpop.permute.xlu0 %347
    %351 = vset.pattern.permute.xlu0 2
    %352 = vperm.xlu0 %351, %v332
    %v353 = vpop.permute.xlu0 %352
    %v355 = vadd.f32 %v343, %v348
    %v356 = vadd.f32 %v344, %v353
    %s357 = scalar_lea.vmem [#allocation6], 16
    %358 = vst [vmem:[%s357] sm:$0xff] %v355
    %359 = vst [vmem:[%s357 + $0x8] sm:$0xff] %v356
    // Predicated region
    $region18: #{tpu_custom_call.1} parent=1 // pred_check
      _
    $region19: #{tpu_custom_call.1} parent=1 // pred_check_branch
      %361 = sbr.rel (0) target = $region21
    $region20: #{tpu_custom_call.1} parent=1 // pred_region
      %363 = vsyncadd [#allocation5], 0
      %s364 = sshll.u32 [#allocation6], 4
      %s365 = int_to_ptr.vmem [resolvable:$true] %s364
      %s366 = sshll.u32 %s3, 4
      %s367 = int_to_ptr.hbm [resolvable:$true] %s366
      %372 = dma.vmem_to_hbm [thread:$0]  %s365, 512, %s367, [#allocation5], 128, 128, 8
    $region21: #{tpu_custom_call.1} parent=1 // pred_fallthru
      _
    // Predicated region
    $region22: #{tpu_custom_call.1} parent=1 // pred_check
      _
    $region23: #{tpu_custom_call.1} parent=1 // pred_check_branch
      %374 = sbr.rel (0) target = $region25
    $region24: #{tpu_custom_call.1} parent=1 // pred_region
      %376 = dma.done [#allocation5], 512
    $region25: #{tpu_custom_call.1} parent=1 // pred_fallthru
      _
    %377 = vsyncpa [#allocation4], 1
    %378 = vsyncpa [#allocation5], 1

</llo_original>
